<compile_context>
chip_gen: v7x
topology: tpu7x:2x2x1
jax: 0.10.0
libtpu: 0.0.40
codegen_flags: <defaults>
</compile_context>

<pallas_src>
import jax
import jax.numpy as jnp
from jax.experimental import pallas as pl
from jax.experimental.pallas import tpu as pltpu


def _round_up(x, m):
    return ((x + m - 1) // m) * m


def _probe_single_buffer():
    """Narrow feature probe (cached at import): does this JAX accept
    BlockSpec(pipeline_mode=pl.Buffered(1)) for grid-invariant blocks?"""
    try:
        pl.BlockSpec((8, 128), lambda i: (0, 0), pipeline_mode=pl.Buffered(1))
        return True
    except (AttributeError, TypeError):
        return False


_SINGLE_BUFFER_OK = _probe_single_buffer()


def _vmem_cap_bytes():
    """Generation-aware VMEM ceiling (~112 MiB v5e/v6e, ~56 MiB v7x).

    Pure capability query; the fallback never masks kernel compile errors.
    """
    try:
        cap = int(pltpu.get_tpu_info().vmem_capacity_bytes)
    except Exception:  # capability probe only
        cap = 64 * 1024 * 1024
    return max(32 * 1024 * 1024, cap * 7 // 8)


# ----------------------------------------------------------------------------
# Kernel
# ----------------------------------------------------------------------------
def popdx_kernel(x_ref,
                 w1_ref, b1_ref,
                 w2_ref, b2_ref,
                 w3_ref, b3_ref,
                 w4_ref, b4_ref,
                 yembt_ref,
                 o_ref,
                 acc1_ref):
    """One (batch_tile, k_tile) step of the fused 4-layer MLP + projection.

    Grid = (batch tiles ["parallel"], feature/K tiles ["arbitrary"]).
    Layer 1 accumulates over the K axis into an f32 VMEM scratch; the
    remaining layers + label projection run once, on the last K step.
    """
    ki = pl.program_id(1)

    @pl.when(ki == 0)
    def _init():
        acc1_ref[...] = jnp.zeros_like(acc1_ref)

    # Layer-1 partial matmul for this K slab (bf16 MXU, f32 accumulate).
    acc1_ref[...] += jnp.dot(x_ref[...], w1_ref[...],
                             preferred_element_type=jnp.float32)

    @pl.when(ki == pl.num_programs(1) - 1)
    def _finalize():
        # Layer-1 epilogue (f32 bias + ReLU on the VPU), then layers 2-4.
        h = jnp.maximum(acc1_ref[...] + b1_ref[...], 0.0).astype(jnp.bfloat16)
        for w_ref, b_ref in ((w2_ref, b2_ref),
                             (w3_ref, b3_ref),
                             (w4_ref, b4_ref)):
            acc = jnp.dot(h, w_ref[...], preferred_element_type=jnp.float32)
            h = jnp.maximum(acc + b_ref[...], 0.0).astype(jnp.bfloat16)
        # Final projection onto the (padded) label space -- no ReLU.
        o_ref[...] = jnp.dot(h, yembt_ref[...],
                             preferred_element_type=jnp.float32
                             ).astype(o_ref.dtype)


# ----------------------------------------------------------------------------
# One-time parameter preparation (hoisted out of the per-call path)
# ----------------------------------------------------------------------------
def prepare_params(params, y_emb, *, pad_to=128, k_tile=512):
    """Transpose nn.Linear weights to (in, out), zero-pad every dim up to a
    multiple of `pad_to` (lane-dense, full-depth MXU) and cast matmul operands
    to bf16.  Biases stay f32 (added in the f32 epilogue).

    pad_to: 128 (default, matches v5e's 4x128^2 MXU and the lane width);
            use 256 on v6e/v7x when real dims exceed 128 (2x256^2 MXU).
    k_tile: K-slab width for streaming the first-layer weight when feature_num
            is large; the feature dim is padded to a multiple of it.
    Zero padding is numerically exact: padded K rows contribute 0, padded
    output columns are relu(0 + 0) = 0 and feed zero weight rows downstream,
    padded label columns are sliced off.
    """
    (w1, b1), (w2, b2), (w3, b3), (w4, b4) = params
    hidden = w1.shape[0]
    feature = w1.shape[1]
    emb = w4.shape[0]
    label = y_emb.shape[0]

    k_tile_eff = min(_round_up(k_tile, pad_to), _round_up(feature, pad_to))
    F = _round_up(feature, k_tile_eff)
    H = _round_up(hidden, pad_to)
    E = _round_up(emb, pad_to)
    L = _round_up(label, pad_to)

    def pad_wt(w, rows, cols):
        wt = jnp.asarray(w, jnp.float32).T
        wt = jnp.pad(wt, ((0, rows - wt.shape[0]), (0, cols - wt.shape[1])))
        return wt.astype(jnp.bfloat16)

    def pad_b(b, cols):
        b = jnp.asarray(b, jnp.float32).reshape(1, -1)
        return jnp.pad(b, ((0, 0), (0, cols - b.shape[1])))

    return dict(
        feature_num=feature, label_num=label,
        F=F, H=H, E=E, L=L, k_tile=k_tile_eff,
        w1t=pad_wt(w1, F, H), b1=pad_b(b1, H),
        w2t=pad_wt(w2, H, H), b2=pad_b(b2, H),
        w3t=pad_wt(w3, H, H), b3=pad_b(b3, H),
        w4t=pad_wt(w4, H, E), b4=pad_b(b4, E),
        yembt=pad_wt(y_emb, E, L),           # (emb, label) padded
    )


# ----------------------------------------------------------------------------
# Forward
# ----------------------------------------------------------------------------
def popdx_forward(x, prepared, *, batch_tile=256, out_dtype=jnp.float32):
    """Fused POPDx forward.

    x          : (B, feature_num) float32 (or bfloat16 to skip the entry cast)
    prepared   : output of prepare_params()
    batch_tile : preferred MXU M tile (256 fills the v6e/v7x MXU; use 128 on
                 v5e).  Automatically clamped to round_up(B, 16) for small
                 batches and shrunk if the VMEM budget would be exceeded.
    out_dtype  : jnp.float32 (default, matches PyTorch) or jnp.bfloat16 to
                 halve the output HBM writeback for huge label spaces.
    returns    : (B, label_num) out_dtype
    """
    B, feature = x.shape
    assert feature == prepared["feature_num"]
    F, H, E, L = prepared["F"], prepared["H"], prepared["E"], prepared["L"]
    k_tile_def = prepared["k_tile"]
    label_num = prepared["label_num"]
    out_isz = jnp.dtype(out_dtype).itemsize

    resident = [prepared["b1"],
                prepared["w2t"], prepared["b2"],
                prepared["w3t"], prepared["b3"],
                prepared["w4t"], prepared["b4"],
                prepared["yembt"]]
    resident_bytes = sum(int(a.size) * a.dtype.itemsize for a in resident)
    rf = 1 if _SINGLE_BUFFER_OK else 2   # resident buffering factor

    cap = _vmem_cap_bytes()

    def need_bytes(bt, kt):
        w1_resident = (kt == F)
        w1_bytes = (rf if w1_resident else 2) * kt * H * 2        # bf16
        x_bytes = 2 * bt * kt * 2                                 # 2 bufs bf16
        out_bytes = 2 * bt * L * out_isz                          # 2 bufs
        acc_bytes = bt * H * 4                                    # f32 scratch
        interm = 4 * bt * max(H, E, L) * 4                        # f32 temps
        return rf * resident_bytes + w1_bytes + x_bytes + out_bytes \
            + acc_bytes + interm

    # --- choose (batch tile, K tile) against the VMEM budget ---------------
    bt = max(16, min(batch_tile, _round_up(B, 16)))   # adaptive for small B
    kt = None
    while True:
        if need_bytes(bt, F) <= cap:
            kt = F                       # w1 fully resident (single K tile)
            break
        if k_tile_def < F and need_bytes(bt, k_tile_def) <= cap:
            kt = k_tile_def              # stream w1 in K slabs
            break
        if bt <= 16:
            kt = k_tile_def if k_tile_def < F else F
            break                        # best effort; clamped below
        bt = max(16, (bt // 2) // 16 * 16)

    B_pad = _round_up(max(B, 1), bt)
    grid = (B_pad // bt, F // kt)

    need = need_bytes(bt, kt)
    vmem_limit = int(min(max(need, 32 * 1024 * 1024), cap))
    # TODO(synk): if the resident H*H / E*L weights alone exceed the per-core
    # VMEM cap (giant hidden_size / label spaces), add K-tiling grid axes for
    # layers 2-4 / the projection as well instead of clamping to `cap`.
    # TODO(synk): add a second "parallel" label-tile grid axis so a
    # single-batch-tile call can shard across both v7x TensorCores.

    # --- input pad / cast: only when it is not a no-op ----------------------
    xp = jnp.asarray(x)
    if xp.dtype != jnp.bfloat16:
        xp = xp.astype(jnp.bfloat16)
    if (B_pad != B) or (F != feature):
        xp = jnp.pad(xp, ((0, B_pad - B), (0, F - feature)))

    # --- BlockSpecs ----------------------------------------------------------
    def resident_spec(arr):
        if _SINGLE_BUFFER_OK:
            # Grid-invariant block: a second pipeline buffer is pure waste.
            return pl.BlockSpec(arr.shape, lambda i, k: (0, 0),
                                pipeline_mode=pl.Buffered(1))
        return pl.BlockSpec(arr.shape, lambda i, k: (0, 0))

    if kt == F and _SINGLE_BUFFER_OK:
        w1_spec = pl.BlockSpec((kt, H), lambda i, k: (k, 0),
                               pipeline_mode=pl.Buffered(1))
    else:
        w1_spec = pl.BlockSpec((kt, H), lambda i, k: (k, 0))

    in_specs = [pl.BlockSpec((bt, kt), lambda i, k: (i, k)),   # x (streamed)
                w1_spec]                                       # w1 (K slabs)
    in_specs += [resident_spec(a) for a in resident]

    out = pl.pallas_call(
        popdx_kernel,
        out_shape=jax.ShapeDtypeStruct((B_pad, L), out_dtype),
        grid_spec=pltpu.PrefetchScalarGridSpec(
            num_scalar_prefetch=0,
            grid=grid,
            in_specs=in_specs,
            out_specs=pl.BlockSpec((bt, L), lambda i, k: (i, 0)),
            scratch_shapes=[pltpu.VMEM((bt, H), jnp.float32)],
        ),
        compiler_params=pltpu.CompilerParams(
            dimension_semantics=("parallel", "arbitrary"),
            vmem_limit_bytes=vmem_limit,
        ),
    )(xp, prepared["w1t"], *resident)

    return out[:B, :label_num]


# ----------------------------------------------------------------------------
# Reference + init
# ----------------------------------------------------------------------------
def init_params(key, feature_num, hidden_size, emb_dim):
    """Deterministic Kaiming-normal-style init matching nn.Linear shapes."""
    dims = [(hidden_size, feature_num),
            (hidden_size, hidden_size),
            (hidden_size, hidden_size),
            (emb_dim, hidden_size)]
    params = []
    for d in dims:
        key, kw, kb = jax.random.split(key, 3)
        fan_in = d[1]
        w = jax.random.normal(kw, d, jnp.float32) * jnp.sqrt(2.0 / fan_in)
        b = jax.random.normal(kb, (d[0],), jnp.float32) * 0.01
        params.append((w, b))
    return key, params


def reference_forward(x, params, y_emb, compute_dtype=jnp.float32):
    """Pure-JAX reference mirroring the PyTorch forward.

    compute_dtype=jnp.bfloat16 emulates the kernel's MXU numerics (bf16
    operands, f32 accumulation) for a tight check.  Note the kernel casts
    activations to bf16 between layers, so error vs. the f32 PyTorch forward
    compounds over the 5 chained matmuls (deliberate numerics tradeoff).
    """
    h = jnp.asarray(x, jnp.float32)
    for w, b in params:
        a = jnp.dot(h.astype(compute_dtype), w.T.astype(compute_dtype),
                    preferred_element_type=jnp.float32)
        h = jnp.maximum(a + b.astype(jnp.float32), 0.0)
    return jnp.dot(h.astype(compute_dtype), y_emb.T.astype(compute_dtype),
                   preferred_element_type=jnp.float32)


if __name__ == "__main__":
    # Small shapes consistent with the module.
    batch = 2
    feature_num = 32
    hidden_size = 32
    emb_dim = 16
    label_num = 24

    key = jax.random.PRNGKey(0)
    key, params = init_params(key, feature_num, hidden_size, emb_dim)
    key, kx, ky = jax.random.split(key, 3)
    x = jax.random.normal(kx, (batch, feature_num), jnp.float32)
    y_emb = jax.random.normal(ky, (label_num, emb_dim), jnp.float32)

    prepared = prepare_params(params, y_emb)      # one-time prep, hoisted
    out = popdx_forward(x, prepared)
    out = jax.block_until_ready(out)
    assert out.shape == (batch, label_num)

    # Tight check against a bf16-matched reference (same arithmetic as kernel).
    ref_bf16 = reference_forward(x, params, y_emb, compute_dtype=jnp.bfloat16)
    assert jnp.allclose(out, ref_bf16, atol=1e-2, rtol=1e-2), \
        "mismatch vs bf16-matched reference"

    # Looser check against the f32 PyTorch-faithful reference (bf16 MXU inputs
    # introduce ~1e-2 relative error).
    ref_f32 = reference_forward(x, params, y_emb)
    assert jnp.allclose(out, ref_f32, atol=1e-1, rtol=5e-2), \
        "mismatch vs f32 reference"

    print("KERNEL_OK")
</pallas_src>

<mosaic_0001>
module attributes {stable_mosaic.version = 11 : i64} {
  func.func @popdx_kernel(%arg0: i32, %arg1: i32, %arg2: memref<16x128xbf16, #tpu.memory_space<vmem>>, %arg3: memref<128x128xbf16, #tpu.memory_space<vmem>>, %arg4: memref<1x128xf32, #tpu.memory_space<vmem>>, %arg5: memref<128x128xbf16, #tpu.memory_space<vmem>>, %arg6: memref<1x128xf32, #tpu.memory_space<vmem>>, %arg7: memref<128x128xbf16, #tpu.memory_space<vmem>>, %arg8: memref<1x128xf32, #tpu.memory_space<vmem>>, %arg9: memref<128x128xbf16, #tpu.memory_space<vmem>>, %arg10: memref<1x128xf32, #tpu.memory_space<vmem>>, %arg11: memref<128x128xbf16, #tpu.memory_space<vmem>>, %arg12: memref<16x128xf32, #tpu.memory_space<vmem>>, %arg13: memref<16x128xf32, #tpu.memory_space<vmem>>) attributes {dimension_semantics = [#tpu.dimension_semantics<parallel>, #tpu.dimension_semantics<arbitrary>], iteration_bounds = array<i64: 1, 1>, scalar_prefetch = 0 : i64, scratch_operands = 1 : i64, tpu.core_type = #tpu.core_type<tc>, window_params = [{transform_indices = @transform_0, window_bounds = array<i64: 16, 128>}, {pipeline_mode = #tpu.pipeline_mode<synchronous>, transform_indices = @transform_1, window_bounds = array<i64: 128, 128>}, {pipeline_mode = #tpu.pipeline_mode<synchronous>, transform_indices = @transform_2, window_bounds = array<i64: 1, 128>}, {pipeline_mode = #tpu.pipeline_mode<synchronous>, transform_indices = @transform_3, window_bounds = array<i64: 128, 128>}, {pipeline_mode = #tpu.pipeline_mode<synchronous>, transform_indices = @transform_4, window_bounds = array<i64: 1, 128>}, {pipeline_mode = #tpu.pipeline_mode<synchronous>, transform_indices = @transform_5, window_bounds = array<i64: 128, 128>}, {pipeline_mode = #tpu.pipeline_mode<synchronous>, transform_indices = @transform_6, window_bounds = array<i64: 1, 128>}, {pipeline_mode = #tpu.pipeline_mode<synchronous>, transform_indices = @transform_7, window_bounds = array<i64: 128, 128>}, {pipeline_mode = #tpu.pipeline_mode<synchronous>, transform_indices = @transform_8, window_bounds = array<i64: 1, 128>}, {pipeline_mode = #tpu.pipeline_mode<synchronous>, transform_indices = @transform_9, window_bounds = array<i64: 128, 128>}, {transform_indices = @transform_10, window_bounds = array<i64: 16, 128>}]} {
    %c0_i32 = arith.constant 0 : i32
    %0 = arith.cmpi eq, %arg1, %c0_i32 : i32
    %1 = arith.extui %0 : i1 to i32
    %c0_i32_0 = arith.constant 0 : i32
    %2 = arith.cmpi ne, %1, %c0_i32_0 : i32
    scf.if %2 {
      %cst_10 = arith.constant 0.000000e+00 : f32
      %12 = vector.broadcast %cst_10 : f32 to vector<16x128xf32>
      %c0_11 = arith.constant 0 : index
      %c0_12 = arith.constant 0 : index
      %13 = vector.load %arg13[%c0_11, %c0_12] : memref<16x128xf32, #tpu.memory_space<vmem>>, vector<16x128xf32>
      tpu.vector_store %arg13[%c0_11, %c0_12], %12 {strides = array<i32>} : memref<16x128xf32, #tpu.memory_space<vmem>>, vector<16x128xf32>,
    } else {
    }
    %c0 = arith.constant 0 : index
    %c0_1 = arith.constant 0 : index
    %3 = vector.load %arg13[%c0, %c0_1] : memref<16x128xf32, #tpu.memory_space<vmem>>, vector<16x128xf32>
    %c0_2 = arith.constant 0 : index
    %c0_3 = arith.constant 0 : index
    %4 = vector.load %arg2[%c0_2, %c0_3] : memref<16x128xbf16, #tpu.memory_space<vmem>>, vector<16x128xbf16>
    %c0_4 = arith.constant 0 : index
    %c0_5 = arith.constant 0 : index
    %5 = vector.load %arg3[%c0_4, %c0_5] : memref<128x128xbf16, #tpu.memory_space<vmem>>, vector<128x128xbf16>
    %cst = arith.constant dense<0.000000e+00> : vector<16x128xf32>
    %6 = tpu.matmul %4, %5, %cst {dimension_numbers = #tpu.dot_dimension_numbers<[1], [0], [0], [1], [0, 0, 1, 1], [], []>} : vector<16x128xbf16>, vector<128x128xbf16>, vector<16x128xf32> -> vector<16x128xf32>
    %7 = arith.addf %3, %6 : vector<16x128xf32>
    %c0_6 = arith.constant 0 : index
    %c0_7 = arith.constant 0 : index
    %8 = vector.load %arg13[%c0_6, %c0_7] : memref<16x128xf32, #tpu.memory_space<vmem>>, vector<16x128xf32>
    tpu.vector_store %arg13[%c0_6, %c0_7], %7 {strides = array<i32>} : memref<16x128xf32, #tpu.memory_space<vmem>>, vector<16x128xf32>,
    %c0_i32_8 = arith.constant 0 : i32
    %9 = arith.cmpi eq, %arg1, %c0_i32_8 : i32
    %10 = arith.extui %9 : i1 to i32
    %c0_i32_9 = arith.constant 0 : i32
    %11 = arith.cmpi ne, %10, %c0_i32_9 : i32
    scf.if %11 {
      %c0_10 = arith.constant 0 : index
      %c0_11 = arith.constant 0 : index
      %12 = vector.load %arg13[%c0_10, %c0_11] : memref<16x128xf32, #tpu.memory_space<vmem>>, vector<16x128xf32>
      %c0_12 = arith.constant 0 : index
      %c0_13 = arith.constant 0 : index
      %13 = vector.load %arg4[%c0_12, %c0_13] : memref<1x128xf32, #tpu.memory_space<vmem>>, vector<1x128xf32>
      %14 = vector.broadcast %13 : vector<1x128xf32> to vector<16x128xf32>
      %15 = arith.addf %12, %14 : vector<16x128xf32>
      %cst_14 = arith.constant 0.000000e+00 : f32
      %16 = vector.broadcast %cst_14 : f32 to vector<16x128xf32>
      %17 = arith.maximumf %15, %16 : vector<16x128xf32>
      %18 = arith.truncf %17 : vector<16x128xf32> to vector<16x128xbf16>
      %c0_15 = arith.constant 0 : index
      %c0_16 = arith.constant 0 : index
      %19 = vector.load %arg5[%c0_15, %c0_16] : memref<128x128xbf16, #tpu.memory_space<vmem>>, vector<128x128xbf16>
      %cst_17 = arith.constant dense<0.000000e+00> : vector<16x128xf32>
      %20 = tpu.matmul %18, %19, %cst_17 {dimension_numbers = #tpu.dot_dimension_numbers<[1], [0], [0], [1], [0, 0, 1, 1], [], []>} : vector<16x128xbf16>, vector<128x128xbf16>, vector<16x128xf32> -> vector<16x128xf32>
      %c0_18 = arith.constant 0 : index
      %c0_19 = arith.constant 0 : index
      %21 = vector.load %arg6[%c0_18, %c0_19] : memref<1x128xf32, #tpu.memory_space<vmem>>, vector<1x128xf32>
      %22 = vector.broadcast %21 : vector<1x128xf32> to vector<16x128xf32>
      %23 = arith.addf %20, %22 : vector<16x128xf32>
      %cst_20 = arith.constant 0.000000e+00 : f32
      %24 = vector.broadcast %cst_20 : f32 to vector<16x128xf32>
      %25 = arith.maximumf %23, %24 : vector<16x128xf32>
      %26 = arith.truncf %25 : vector<16x128xf32> to vector<16x128xbf16>
      %c0_21 = arith.constant 0 : index
      %c0_22 = arith.constant 0 : index
      %27 = vector.load %arg7[%c0_21, %c0_22] : memref<128x128xbf16, #tpu.memory_space<vmem>>, vector<128x128xbf16>
      %cst_23 = arith.constant dense<0.000000e+00> : vector<16x128xf32>
      %28 = tpu.matmul %26, %27, %cst_23 {dimension_numbers = #tpu.dot_dimension_numbers<[1], [0], [0], [1], [0, 0, 1, 1], [], []>} : vector<16x128xbf16>, vector<128x128xbf16>, vector<16x128xf32> -> vector<16x128xf32>
      %c0_24 = arith.constant 0 : index
      %c0_25 = arith.constant 0 : index
      %29 = vector.load %arg8[%c0_24, %c0_25] : memref<1x128xf32, #tpu.memory_space<vmem>>, vector<1x128xf32>
      %30 = vector.broadcast %29 : vector<1x128xf32> to vector<16x128xf32>
      %31 = arith.addf %28, %30 : vector<16x128xf32>
      %cst_26 = arith.constant 0.000000e+00 : f32
      %32 = vector.broadcast %cst_26 : f32 to vector<16x128xf32>
      %33 = arith.maximumf %31, %32 : vector<16x128xf32>
      %34 = arith.truncf %33 : vector<16x128xf32> to vector<16x128xbf16>
      %c0_27 = arith.constant 0 : index
      %c0_28 = arith.constant 0 : index
      %35 = vector.load %arg9[%c0_27, %c0_28] : memref<128x128xbf16, #tpu.memory_space<vmem>>, vector<128x128xbf16>
      %cst_29 = arith.constant dense<0.000000e+00> : vector<16x128xf32>
      %36 = tpu.matmul %34, %35, %cst_29 {dimension_numbers = #tpu.dot_dimension_numbers<[1], [0], [0], [1], [0, 0, 1, 1], [], []>} : vector<16x128xbf16>, vector<128x128xbf16>, vector<16x128xf32> -> vector<16x128xf32>
      %c0_30 = arith.constant 0 : index
      %c0_31 = arith.constant 0 : index
      %37 = vector.load %arg10[%c0_30, %c0_31] : memref<1x128xf32, #tpu.memory_space<vmem>>, vector<1x128xf32>
      %38 = vector.broadcast %37 : vector<1x128xf32> to vector<16x128xf32>
      %39 = arith.addf %36, %38 : vector<16x128xf32>
      %cst_32 = arith.constant 0.000000e+00 : f32
      %40 = vector.broadcast %cst_32 : f32 to vector<16x128xf32>
      %41 = arith.maximumf %39, %40 : vector<16x128xf32>
      %42 = arith.truncf %41 : vector<16x128xf32> to vector<16x128xbf16>
      %c0_33 = arith.constant 0 : index
      %c0_34 = arith.constant 0 : index
      %43 = vector.load %arg11[%c0_33, %c0_34] : memref<128x128xbf16, #tpu.memory_space<vmem>>, vector<128x128xbf16>
      %cst_35 = arith.constant dense<0.000000e+00> : vector<16x128xf32>
      %44 = tpu.matmul %42, %43, %cst_35 {dimension_numbers = #tpu.dot_dimension_numbers<[1], [0], [0], [1], [0, 0, 1, 1], [], []>} : vector<16x128xbf16>, vector<128x128xbf16>, vector<16x128xf32> -> vector<16x128xf32>
      %c0_36 = arith.constant 0 : index
      %c0_37 = arith.constant 0 : index
      %45 = vector.load %arg12[%c0_36, %c0_37] : memref<16x128xf32, #tpu.memory_space<vmem>>, vector<16x128xf32>
      tpu.vector_store %arg12[%c0_36, %c0_37], %44 {strides = array<i32>} : memref<16x128xf32, #tpu.memory_space<vmem>>, vector<16x128xf32>,
    } else {
    }
    return
  }
  func.func @transform_0(%arg0: i32, %arg1: i32) -> (i32, i32) {
    %c0_i32 = arith.constant 0 : i32
    return %arg0, %arg1 : i32, i32
  }
  func.func @transform_1(%arg0: i32, %arg1: i32) -> (i32, i32) {
    %c0_i32 = arith.constant 0 : i32
    %c0_i32_0 = arith.constant 0 : i32
    return %arg1, %c0_i32 : i32, i32
  }
  func.func @transform_2(%arg0: i32, %arg1: i32) -> (i32, i32) {
    %c0_i32 = arith.constant 0 : i32
    %c0_i32_0 = arith.constant 0 : i32
    %c0_i32_1 = arith.constant 0 : i32
    return %c0_i32, %c0_i32_0 : i32, i32
  }
  func.func @transform_3(%arg0: i32, %arg1: i32) -> (i32, i32) {
    %c0_i32 = arith.constant 0 : i32
    %c0_i32_0 = arith.constant 0 : i32
    %c0_i32_1 = arith.constant 0 : i32
    return %c0_i32, %c0_i32_0 : i32, i32
  }
  func.func @transform_4(%arg0: i32, %arg1: i32) -> (i32, i32) {
    %c0_i32 = arith.constant 0 : i32
    %c0_i32_0 = arith.constant 0 : i32
    %c0_i32_1 = arith.constant 0 : i32
    return %c0_i32, %c0_i32_0 : i32, i32
  }
  func.func @transform_5(%arg0: i32, %arg1: i32) -> (i32, i32) {
    %c0_i32 = arith.constant 0 : i32
    %c0_i32_0 = arith.constant 0 : i32
    %c0_i32_1 = arith.constant 0 : i32
    return %c0_i32, %c0_i32_0 : i32, i32
  }
  func.func @transform_6(%arg0: i32, %arg1: i32) -> (i32, i32) {
    %c0_i32 = arith.constant 0 : i32
    %c0_i32_0 = arith.constant 0 : i32
    %c0_i32_1 = arith.constant 0 : i32
    return %c0_i32, %c0_i32_0 : i32, i32
  }
  func.func @transform_7(%arg0: i32, %arg1: i32) -> (i32, i32) {
    %c0_i32 = arith.constant 0 : i32
    %c0_i32_0 = arith.constant 0 : i32
    %c0_i32_1 = arith.constant 0 : i32
    return %c0_i32, %c0_i32_0 : i32, i32
  }
  func.func @transform_8(%arg0: i32, %arg1: i32) -> (i32, i32) {
    %c0_i32 = arith.constant 0 : i32
    %c0_i32_0 = arith.constant 0 : i32
    %c0_i32_1 = arith.constant 0 : i32
    return %c0_i32, %c0_i32_0 : i32, i32
  }
  func.func @transform_9(%arg0: i32, %arg1: i32) -> (i32, i32) {
    %c0_i32 = arith.constant 0 : i32
    %c0_i32_0 = arith.constant 0 : i32
    %c0_i32_1 = arith.constant 0 : i32
    return %c0_i32, %c0_i32_0 : i32, i32
  }
  func.func @transform_10(%arg0: i32, %arg1: i32) -> (i32, i32) {
    %c0_i32 = arith.constant 0 : i32
    %c0_i32_0 = arith.constant 0 : i32
    return %arg0, %c0_i32 : i32, i32
  }
}

</mosaic_0001>

<llo_original>
// kernel: tpu_custom_call.1
$region0: #{tpu_custom_call.1}
  #allocation0 [shape = 'u32[]', space=smem, size = 0x4, offset = 0x4, fixed_abs, tag = 'smem constant byte address 0x4 - core index']
  #allocation1 [shape = 'u32[144,128]{1,0:T(1,128)}', space=vmem, size = 0x12000, scoped, tag = 'internal scratch']
  #allocation2 [shape = 'f32[16,128]{1,0:T(8,128)}', space=vmem, size = 0x2000, scoped, tag = 'scratch operand']
  %s0 = inlined_call_operand.hbm [shape: bf16[16,128], index: 0, kind: input, shape index: {}]
  %s1 = inlined_call_operand.hbm [shape: bf16[128,128], index: 1, kind: input, shape index: {}]
  %s2 = inlined_call_operand.vmem [shape: f32[1,128], index: 2, kind: input, shape index: {}]
  %s3 = inlined_call_operand.hbm [shape: bf16[128,128], index: 3, kind: input, shape index: {}]
  %s4 = inlined_call_operand.vmem [shape: f32[1,128], index: 4, kind: input, shape index: {}]
  %s5 = inlined_call_operand.hbm [shape: bf16[128,128], index: 5, kind: input, shape index: {}]
  %s6 = inlined_call_operand.vmem [shape: f32[1,128], index: 6, kind: input, shape index: {}]
  %s7 = inlined_call_operand.hbm [shape: bf16[128,128], index: 7, kind: input, shape index: {}]
  %s8 = inlined_call_operand.vmem [shape: f32[1,128], index: 8, kind: input, shape index: {}]
  %s9 = inlined_call_operand.hbm [shape: bf16[128,128], index: 9, kind: input, shape index: {}]
  %s10 = inlined_call_operand.hbm [shape: f32[16,128], index: 10, kind: output, shape index: {}]
  %s11 = sld [smem:[#allocation0]]
  $region82: #{tpu_custom_call.1} parent=0
    _
  %s13 = ssub.s32 1, %s11
  %s14 = scalar_select 0, %s13, %s11
  $region1: #{tpu_custom_call.1} parent=0
    #allocation3 [shape = 'u8[4096]{0}', space=vmem, size = 0x1000, scoped, tag = 'input window, operand 0, single buffered']
    #allocation4 [shape = 's32[1]{0}', space=sflag, size = 0x4, scoped, tag = 'scoped memory for tpu_custom_call.1']
    #allocation5 [shape = 's32[1]{0}', space=sflag, size = 0x4, scoped, tag = 'scoped memory for tpu_custom_call.1']
    #allocation6 [shape = 'u8[32768]{0}', space=vmem, size = 0x8000, scoped, tag = 'input window, operand 1, single buffered']
    #allocation7 [shape = 's32[1]{0}', space=sflag, size = 0x4, scoped, tag = 'scoped memory for tpu_custom_call.1']
    #allocation8 [shape = 'u8[32768]{0}', space=vmem, size = 0x8000, scoped, tag = 'input window, operand 3, single buffered']
    #allocation9 [shape = 'u8[32768]{0}', space=vmem, size = 0x8000, scoped, tag = 'input window, operand 5, single buffered']
    #allocation10 [shape = 's32[1]{0}', space=sflag, size = 0x4, scoped, tag = 'scoped memory for tpu_custom_call.1']
    #allocation11 [shape = 'u8[32768]{0}', space=vmem, size = 0x8000, scoped, tag = 'input window, operand 7, single buffered']
    #allocation12 [shape = 'u8[32768]{0}', space=vmem, size = 0x8000, scoped, tag = 'input window, operand 9, single buffered']
    #allocation13 [shape = 's32[1]{0}', space=sflag, size = 0x4, scoped, tag = 'scoped memory for tpu_custom_call.1']
    #allocation14 [shape = 'u8[8192]{0}', space=vmem, size = 0x2000, scoped, tag = 'output window, operand 0, single buffered']
    %15 = vsyncpa [#allocation4], 0
    %16 = vsyncpa [#allocation7], 0
    %17 = vsyncpa [#allocation10], 0
    %18 = vsyncpa [#allocation13], 0
    %19 = vsyncpa [#allocation5], 0
    // Predicated region
    $region2: #{tpu_custom_call.1} parent=1 // pred_check
      _
    $region3: #{tpu_custom_call.1} parent=1 // pred_check_branch
      %21 = sbr.rel (0) target = $region5
    $region4: #{tpu_custom_call.1} parent=1 // pred_region
      %s23 = ssub.s32 128, 128
      %24 = vsyncadd [#allocation4], %s23
      %s25 = sshll.u32 [#allocation3], 4
      %s26 = int_to_ptr.vmem [resolvable:$true] %s25
      %31 = dma.hbm_to_vmem [thread:$0]  %s0, 128, %s26, [#allocation4], 64, 64, 4
    $region5: #{tpu_custom_call.1} parent=1 // pred_fallthru
      _
    // Predicated region
    $region6: #{tpu_custom_call.1} parent=1 // pred_check
      _
    $region7: #{tpu_custom_call.1} parent=1 // pred_check_branch
      %33 = sbr.rel (0) target = $region9
    $region8: #{tpu_custom_call.1} parent=1 // pred_region
      %s35 = ssub.s32 1024, 1024
      %36 = vsyncadd [#allocation7], %s35
      %s37 = sshll.u32 [#allocation6], 4
      %s38 = int_to_ptr.vmem [resolvable:$true] %s37
      %43 = dma.hbm_to_vmem [thread:$0]  %s1, 1024, %s38, [#allocation7], 64, 64, 4
    $region9: #{tpu_custom_call.1} parent=1 // pred_fallthru
      _
    // Predicated region
    $region10: #{tpu_custom_call.1} parent=1 // pred_check
      _
    $region11: #{tpu_custom_call.1} parent=1 // pred_check_branch
      %45 = sbr.rel (0) target = $region13
    $region12: #{tpu_custom_call.1} parent=1 // pred_region
      _
    $region13: #{tpu_custom_call.1} parent=1 // pred_fallthru
      _
    // Predicated region
    $region14: #{tpu_custom_call.1} parent=1 // pred_check
      _
    $region15: #{tpu_custom_call.1} parent=1 // pred_check_branch
      %47 = sbr.rel (0) target = $region17
    $region16: #{tpu_custom_call.1} parent=1 // pred_region
      %s49 = ssub.s32 1024, 1024
      %50 = vsyncadd [#allocation7], %s49
      %s51 = sshll.u32 [#allocation8], 4
      %s52 = int_to_ptr.vmem [resolvable:$true] %s51
      %57 = dma.hbm_to_vmem [thread:$0]  %s3, 1024, %s52, [#allocation7], 64, 64, 4
    $region17: #{tpu_custom_call.1} parent=1 // pred_fallthru
      _
    // Predicated region
    $region18: #{tpu_custom_call.1} parent=1 // pred_check
      _
    $region19: #{tpu_custom_call.1} parent=1 // pred_check_branch
      %59 = sbr.rel (0) target = $region21
    $region20: #{tpu_custom_call.1} parent=1 // pred_region
      _
    $region21: #{tpu_custom_call.1} parent=1 // pred_fallthru
      _
    // Predicated region
    $region22: #{tpu_custom_call.1} parent=1 // pred_check
      _
    $region23: #{tpu_custom_call.1} parent=1 // pred_check_branch
      %61 = sbr.rel (0) target = $region25
    $region24: #{tpu_custom_call.1} parent=1 // pred_region
      %s63 = ssub.s32 1024, 1024
      %64 = vsyncadd [#allocation10], %s63
      %s65 = sshll.u32 [#allocation9], 4
      %s66 = int_to_ptr.vmem [resolvable:$true] %s65
      %71 = dma.hbm_to_vmem [thread:$0]  %s5, 1024, %s66, [#allocation10], 64, 64, 4
    $region25: #{tpu_custom_call.1} parent=1 // pred_fallthru
      _
    // Predicated region
    $region26: #{tpu_custom_call.1} parent=1 // pred_check
      _
    $region27: #{tpu_custom_call.1} parent=1 // pred_check_branch
      %73 = sbr.rel (0) target = $region29
    $region28: #{tpu_custom_call.1} parent=1 // pred_region
      _
    $region29: #{tpu_custom_call.1} parent=1 // pred_fallthru
      _
    // Predicated region
    $region30: #{tpu_custom_call.1} parent=1 // pred_check
      _
    $region31: #{tpu_custom_call.1} parent=1 // pred_check_branch
      %75 = sbr.rel (0) target = $region33
    $region32: #{tpu_custom_call.1} parent=1 // pred_region
      %s77 = ssub.s32 1024, 1024
      %78 = vsyncadd [#allocation10], %s77
      %s79 = sshll.u32 [#allocation11], 4
      %s80 = int_to_ptr.vmem [resolvable:$true] %s79
      %85 = dma.hbm_to_vmem [thread:$0]  %s7, 1024, %s80, [#allocation10], 64, 64, 4
    $region33: #{tpu_custom_call.1} parent=1 // pred_fallthru
      _
    // Predicated region
    $region34: #{tpu_custom_call.1} parent=1 // pred_check
      _
    $region35: #{tpu_custom_call.1} parent=1 // pred_check_branch
      %87 = sbr.rel (0) target = $region37
    $region36: #{tpu_custom_call.1} parent=1 // pred_region
      _
    $region37: #{tpu_custom_call.1} parent=1 // pred_fallthru
      _
    // Predicated region
    $region38: #{tpu_custom_call.1} parent=1 // pred_check
      _
    $region39: #{tpu_custom_call.1} parent=1 // pred_check_branch
      %89 = sbr.rel (0) target = $region41
    $region40: #{tpu_custom_call.1} parent=1 // pred_region
      %s91 = ssub.s32 1024, 1024
      %92 = vsyncadd [#allocation13], %s91
      %s93 = sshll.u32 [#allocation12], 4
      %s94 = int_to_ptr.vmem [resolvable:$true] %s93
      %99 = dma.hbm_to_vmem [thread:$0]  %s9, 1024, %s94, [#allocation13], 64, 64, 4
    $region41: #{tpu_custom_call.1} parent=1 // pred_fallthru
      _
    // Predicated region
    $region42: #{tpu_custom_call.1} parent=1 // pred_check
      _
    $region43: #{tpu_custom_call.1} parent=1 // pred_check_branch
      %101 = sbr.rel (0) target = $region45
    $region44: #{tpu_custom_call.1} parent=1 // pred_region
      %102 = dma.done [#allocation4], 128
    $region45: #{tpu_custom_call.1} parent=1 // pred_fallthru
      _
    // Predicated region
    $region46: #{tpu_custom_call.1} parent=1 // pred_check
      _
    $region47: #{tpu_custom_call.1} parent=1 // pred_check_branch
      %104 = sbr.rel (0) target = $region49
    $region48: #{tpu_custom_call.1} parent=1 // pred_region
      %105 = dma.done [#allocation7], 1024
    $region49: #{tpu_custom_call.1} parent=1 // pred_fallthru
      _
    // Predicated region
    $region50: #{tpu_custom_call.1} parent=1 // pred_check
      _
    $region51: #{tpu_custom_call.1} parent=1 // pred_check_branch
      %107 = sbr.rel (0) target = $region53
    $region52: #{tpu_custom_call.1} parent=1 // pred_region
      %108 = dma.done [#allocation7], 1024
    $region53: #{tpu_custom_call.1} parent=1 // pred_fallthru
      _
    // Predicated region
    $region54: #{tpu_custom_call.1} parent=1 // pred_check
      _
    $region55: #{tpu_custom_call.1} parent=1 // pred_check_branch
      %110 = sbr.rel (0) target = $region57
    $region56: #{tpu_custom_call.1} parent=1 // pred_region
      %111 = dma.done [#allocation10], 1024
    $region57: #{tpu_custom_call.1} parent=1 // pred_fallthru
      _
    // Predicated region
    $region58: #{tpu_custom_call.1} parent=1 // pred_check
      _
    $region59: #{tpu_custom_call.1} parent=1 // pred_check_branch
      %113 = sbr.rel (0) target = $region61
    $region60: #{tpu_custom_call.1} parent=1 // pred_region
      %114 = dma.done [#allocation10], 1024
    $region61: #{tpu_custom_call.1} parent=1 // pred_fallthru
      _
    // Predicated region
    $region62: #{tpu_custom_call.1} parent=1 // pred_check
      _
    $region63: #{tpu_custom_call.1} parent=1 // pred_check_branch
      %116 = sbr.rel (0) target = $region65
    $region64: #{tpu_custom_call.1} parent=1 // pred_region
      %117 = dma.done [#allocation13], 1024
    $region65: #{tpu_custom_call.1} parent=1 // pred_fallthru
      _
    %p119 = scmp.eq.s32.totalorder 0, 0
    // Predicated region
    $region66: #{tpu_custom_call.1} parent=1 // pred_check
      %p120 = pneg %p119
    $region67: #{tpu_custom_call.1} parent=1 // pred_check_branch
      %122 = sbr.rel (%p120) target = $region69
    $region68: #{tpu_custom_call.1} parent=1 // pred_region
      %123 = vst [vmem:[#allocation2] sm:$0xff] 0.0
      %124 = vst [vmem:[#allocation2 + $0x8] sm:$0xff] 0.0
    $region69: #{tpu_custom_call.1} parent=1 // pred_fallthru
      _
    %v125 = vld [vmem:[#allocation2] sm:$0xff]
    %v126 = vld [vmem:[#allocation2 + $0x8] sm:$0xff]
    %v127 = vld [vmem:[#allocation3] sm:$0xf]
    %v128 = vld [vmem:[#allocation3 + $0x4] sm:$0xf]
    %v129 = vld [vmem:[#allocation6] sm:$0xf]
    %v130 = vld [vmem:[#allocation6 + $0x4] sm:$0xf]
    %v131 = vld [vmem:[#allocation6 + $0x8] sm:$0xf]
    %v132 = vld [vmem:[#allocation6 + $0xc] sm:$0xf]
    %v133 = vld [vmem:[#allocation6 + $0x10] sm:$0xf]
    %v134 = vld [vmem:[#allocation6 + $0x14] sm:$0xf]
    %v135 = vld [vmem:[#allocation6 + $0x18] sm:$0xf]
    %v136 = vld [vmem:[#allocation6 + $0x1c] sm:$0xf]
    %v137 = vld [vmem:[#allocation6 + $0x20] sm:$0xf]
    %v138 = vld [vmem:[#allocation6 + $0x24] sm:$0xf]
    %v139 = vld [vmem:[#allocation6 + $0x28] sm:$0xf]
    %v140 = vld [vmem:[#allocation6 + $0x2c] sm:$0xf]
    %v141 = vld [vmem:[#allocation6 + $0x30] sm:$0xf]
    %v142 = vld [vmem:[#allocation6 + $0x34] sm:$0xf]
    %v143 = vld [vmem:[#allocation6 + $0x38] sm:$0xf]
    %v144 = vld [vmem:[#allocation6 + $0x3c] sm:$0xf]
    %v147 = vunpack.c.l.b16 %v127
    %v148 = vunpack.c.l.b16 %v128
    %v149 = vpack.c.b16 %v148, %v147
    %v167 = vunpack.c.l.b16 %v129
    %v168 = vunpack.c.l.b16 %v130
    %v169 = vunpack.c.l.b16 %v131
    %v170 = vunpack.c.l.b16 %v132
    %v171 = vunpack.c.l.b16 %v133
    %v172 = vunpack.c.l.b16 %v134
    %v173 = vunpack.c.l.b16 %v135
    %v174 = vunpack.c.l.b16 %v136
    %v175 = vunpack.c.l.b16 %v137
    %v176 = vunpack.c.l.b16 %v138
    %v177 = vunpack.c.l.b16 %v139
    %v178 = vunpack.c.l.b16 %v140
    %v179 = vunpack.c.l.b16 %v141
    %v180 = vunpack.c.l.b16 %v142
    %v181 = vunpack.c.l.b16 %v143
    %v182 = vunpack.c.l.b16 %v144
    %v183 = vpack.c.b16 %v168, %v167
    %v184 = vpack.c.b16 %v170, %v169
    %v185 = vpack.c.b16 %v172, %v171
    %v186 = vpack.c.b16 %v174, %v173
    %v187 = vpack.c.b16 %v176, %v175
    %v188 = vpack.c.b16 %v178, %v177
    %v189 = vpack.c.b16 %v180, %v179
    %v190 = vpack.c.b16 %v182, %v181
    %199 = vmatprep.subr.bf16.mxu0 0
    %200 = vmatpush1.bf16.msra.mxu0 %v183
    %201 = vmatprep.subr.bf16.mxu0 0
    %202 = vmatpush1.bf16.msra.mxu0 %v184
    %203 = vmatprep.subr.bf16.mxu0 0
    %204 = vmatpush1.bf16.msra.mxu0 %v185
    %205 = vmatprep.subr.bf16.mxu0 0
    %206 = vmatpush1.bf16.msra.mxu0 %v186
    %207 = vmatprep.subr.bf16.mxu0 0
    %208 = vmatpush1.bf16.msra.mxu0 %v187
    %209 = vmatprep.subr.bf16.mxu0 0
    %210 = vmatpush1.bf16.msra.mxu0 %v188
    %211 = vmatprep.subr.bf16.mxu0 0
    %212 = vmatpush1.bf16.msra.mxu0 %v189
    %213 = vmatprep.subr.bf16.mxu0 0
    %214 = vmatpush1.bf16.msra.mxu0 %v190
    %215 = vmatprep.subr.bf16.mxu0 0
    %216 = vmatpush1.bf16.msra.mxu0 0
    %217 = vmatprep.subr.bf16.mxu0 0
    %218 = vmatpush1.bf16.msra.mxu0 0
    %219 = vmatprep.subr.bf16.mxu0 0
    %220 = vmatpush1.bf16.msra.mxu0 0
    %221 = vmatprep.subr.bf16.mxu0 0
    %222 = vmatpush1.bf16.msra.mxu0 0
    %223 = vmatprep.subr.bf16.mxu0 0
    %224 = vmatpush1.bf16.msra.mxu0 0
    %225 = vmatprep.subr.bf16.mxu0 0
    %226 = vmatpush1.bf16.msra.mxu0 0
    %227 = vmatprep.subr.bf16.mxu0 0
    %228 = vmatpush1.bf16.msra.mxu0 0
    %229 = vmatprep.subr.bf16.mxu0 0
    %230 = vmatpush1.bf16.msra.mxu0 0
    %231 = vmatprep.mubr.bf16.mxu0 0
    %232 = vmatmul.mubr.bf16.gmra.mrb[0].mxu0 %v149
    %v233 = vpop.f32.mrb[0].mxu0
    %v234 = vadd.f32 0.0, %v233
    %v235 = vpop.f32.mrb[0].mxu0
    %v236 = vpop.f32.mrb[0].mxu0
    %v237 = vadd.f32 0.0, %v236
    %v238 = vpop.f32.mrb[0].mxu0
    %239 = vdwg.mxu0
    %v240 = vadd.f32 %v125, %v234
    %v241 = vadd.f32 %v126, %v237
    %242 = vst [vmem:[#allocation2] sm:$0xff] %v240
    %243 = vst [vmem:[#allocation2 + $0x8] sm:$0xff] %v241
    // Predicated region
    $region70: #{tpu_custom_call.1} parent=1 // pred_check
      %p244 = pneg %p119
    $region71: #{tpu_custom_call.1} parent=1 // pred_check_branch
      %246 = sbr.rel (%p244) target = $region73
    $region72: #{tpu_custom_call.1} parent=1 // pred_region
      %v247 = vld [vmem:[#allocation2] sm:$0xff]
      %v248 = vld [vmem:[#allocation2 + $0x8] sm:$0xff]
      %v249 = vld [vmem:[%s2] sm:$0x1]
      %v251 = vlaneseq
      %v252 = vshrl.u32 %v251, 7
      %v253 = vsub.s32 0, %v252
      %v254 = vrot.slane %v249, %v253
      %v256 = vadd.f32 %v247, %v254
      %v257 = vadd.f32 %v248, %v254
      %v258 = vmax.f32 %v256, 0.0
      %v259 = vmax.f32 %v257, 0.0
      %v260 = vpack.c.bf16 %v259, %v258
      %v261 = vld [vmem:[#allocation8] sm:$0xf]
      %v262 = vld [vmem:[#allocation8 + $0x4] sm:$0xf]
      %v263 = vld [vmem:[#allocation8 + $0x8] sm:$0xf]
      %v264 = vld [vmem:[#allocation8 + $0xc] sm:$0xf]
      %v265 = vld [vmem:[#allocation8 + $0x10] sm:$0xf]
      %v266 = vld [vmem:[#allocation8 + $0x14] sm:$0xf]
      %v267 = vld [vmem:[#allocation8 + $0x18] sm:$0xf]
      %v268 = vld [vmem:[#allocation8 + $0x1c] sm:$0xf]
      %v269 = vld [vmem:[#allocation8 + $0x20] sm:$0xf]
      %v270 = vld [vmem:[#allocation8 + $0x24] sm:$0xf]
      %v271 = vld [vmem:[#allocation8 + $0x28] sm:$0xf]
      %v272 = vld [vmem:[#allocation8 + $0x2c] sm:$0xf]
      %v273 = vld [vmem:[#allocation8 + $0x30] sm:$0xf]
      %v274 = vld [vmem:[#allocation8 + $0x34] sm:$0xf]
      %v275 = vld [vmem:[#allocation8 + $0x38] sm:$0xf]
      %v276 = vld [vmem:[#allocation8 + $0x3c] sm:$0xf]
      %v277 = vld [vmem:[%s4] sm:$0x1]
      %v279 = vlaneseq
      %v280 = vshrl.u32 %v279, 7
      %v281 = vsub.s32 0, %v280
      %v282 = vrot.slane %v277, %v281
      %v300 = vunpack.c.l.b16 %v261
      %v301 = vunpack.c.l.b16 %v262
      %v302 = vunpack.c.l.b16 %v263
      %v303 = vunpack.c.l.b16 %v264
      %v304 = vunpack.c.l.b16 %v265
      %v305 = vunpack.c.l.b16 %v266
      %v306 = vunpack.c.l.b16 %v267
      %v307 = vunpack.c.l.b16 %v268
      %v308 = vunpack.c.l.b16 %v269
      %v309 = vunpack.c.l.b16 %v270
      %v310 = vunpack.c.l.b16 %v271
      %v311 = vunpack.c.l.b16 %v272
      %v312 = vunpack.c.l.b16 %v273
      %v313 = vunpack.c.l.b16 %v274
      %v314 = vunpack.c.l.b16 %v275
      %v315 = vunpack.c.l.b16 %v276
      %v316 = vpack.c.b16 %v301, %v300
      %v317 = vpack.c.b16 %v303, %v302
      %v318 = vpack.c.b16 %v305, %v304
      %v319 = vpack.c.b16 %v307, %v306
      %v320 = vpack.c.b16 %v309, %v308
      %v321 = vpack.c.b16 %v311, %v310
      %v322 = vpack.c.b16 %v313, %v312
      %v323 = vpack.c.b16 %v315, %v314
      %332 = vmatprep.subr.bf16.mxu0 0
      %333 = vmatpush1.bf16.msra.mxu0 %v316
      %334 = vmatprep.subr.bf16.mxu0 0
      %335 = vmatpush1.bf16.msra.mxu0 %v317
      %336 = vmatprep.subr.bf16.mxu0 0
      %337 = vmatpush1.bf16.msra.mxu0 %v318
      %338 = vmatprep.subr.bf16.mxu0 0
      %339 = vmatpush1.bf16.msra.mxu0 %v319
      %340 = vmatprep.subr.bf16.mxu0 0
      %341 = vmatpush1.bf16.msra.mxu0 %v320
      %342 = vmatprep.subr.bf16.mxu0 0
      %343 = vmatpush1.bf16.msra.mxu0 %v321
      %344 = vmatprep.subr.bf16.mxu0 0
      %345 = vmatpush1.bf16.msra.mxu0 %v322
      %346 = vmatprep.subr.bf16.mxu0 0
      %347 = vmatpush1.bf16.msra.mxu0 %v323
      %348 = vmatprep.subr.bf16.mxu0 0
      %349 = vmatpush1.bf16.msra.mxu0 0
      %350 = vmatprep.subr.bf16.mxu0 0
      %351 = vmatpush1.bf16.msra.mxu0 0
      %352 = vmatprep.subr.bf16.mxu0 0
      %353 = vmatpush1.bf16.msra.mxu0 0
      %354 = vmatprep.subr.bf16.mxu0 0
      %355 = vmatpush1.bf16.msra.mxu0 0
      %356 = vmatprep.subr.bf16.mxu0 0
      %357 = vmatpush1.bf16.msra.mxu0 0
      %358 = vmatprep.subr.bf16.mxu0 0
      %359 = vmatpush1.bf16.msra.mxu0 0
      %360 = vmatprep.subr.bf16.mxu0 0
      %361 = vmatpush1.bf16.msra.mxu0 0
      %362 = vmatprep.subr.bf16.mxu0 0
      %363 = vmatpush1.bf16.msra.mxu0 0
      %364 = vmatprep.mubr.bf16.mxu0 0
      %365 = vmatmul.mubr.bf16.gmra.mrb[0].mxu0 %v260
      %v366 = vpop.f32.mrb[0].mxu0
      %v367 = vadd.f32 %v282, %v366
      %v368 = vpop.f32.mrb[0].mxu0
      %v369 = vpop.f32.mrb[0].mxu0
      %v370 = vadd.f32 %v282, %v369
      %v371 = vpop.f32.mrb[0].mxu0
      %372 = vdwg.mxu0
      %v373 = vmax.f32 %v367, 0.0
      %v374 = vmax.f32 %v370, 0.0
      %v375 = vpack.c.bf16 %v374, %v373
      %v376 = vld [vmem:[#allocation9] sm:$0xf]
      %v377 = vld [vmem:[#allocation9 + $0x4] sm:$0xf]
      %v378 = vld [vmem:[#allocation9 + $0x8] sm:$0xf]
      %v379 = vld [vmem:[#allocation9 + $0xc] sm:$0xf]
      %v380 = vld [vmem:[#allocation9 + $0x10] sm:$0xf]
      %v381 = vld [vmem:[#allocation9 + $0x14] sm:$0xf]
      %v382 = vld [vmem:[#allocation9 + $0x18] sm:$0xf]
      %v383 = vld [vmem:[#allocation9 + $0x1c] sm:$0xf]
      %v384 = vld [vmem:[#allocation9 + $0x20] sm:$0xf]
      %v385 = vld [vmem:[#allocation9 + $0x24] sm:$0xf]
      %v386 = vld [vmem:[#allocation9 + $0x28] sm:$0xf]
      %v387 = vld [vmem:[#allocation9 + $0x2c] sm:$0xf]
      %v388 = vld [vmem:[#allocation9 + $0x30] sm:$0xf]
      %v389 = vld [vmem:[#allocation9 + $0x34] sm:$0xf]
      %v390 = vld [vmem:[#allocation9 + $0x38] sm:$0xf]
      %v391 = vld [vmem:[#allocation9 + $0x3c] sm:$0xf]
      %v392 = vld [vmem:[%s6] sm:$0x1]
      %v394 = vlaneseq
      %v395 = vshrl.u32 %v394, 7
      %v396 = vsub.s32 0, %v395
      %v397 = vrot.slane %v392, %v396
      %v415 = vunpack.c.l.b16 %v376
      %v416 = vunpack.c.l.b16 %v377
      %v417 = vunpack.c.l.b16 %v378
      %v418 = vunpack.c.l.b16 %v379
      %v419 = vunpack.c.l.b16 %v380
      %v420 = vunpack.c.l.b16 %v381
      %v421 = vunpack.c.l.b16 %v382
      %v422 = vunpack.c.l.b16 %v383
      %v423 = vunpack.c.l.b16 %v384
      %v424 = vunpack.c.l.b16 %v385
      %v425 = vunpack.c.l.b16 %v386
      %v426 = vunpack.c.l.b16 %v387
      %v427 = vunpack.c.l.b16 %v388
      %v428 = vunpack.c.l.b16 %v389
      %v429 = vunpack.c.l.b16 %v390
      %v430 = vunpack.c.l.b16 %v391
      %v431 = vpack.c.b16 %v416, %v415
      %v432 = vpack.c.b16 %v418, %v417
      %v433 = vpack.c.b16 %v420, %v419
      %v434 = vpack.c.b16 %v422, %v421
      %v435 = vpack.c.b16 %v424, %v423
      %v436 = vpack.c.b16 %v426, %v425
      %v437 = vpack.c.b16 %v428, %v427
      %v438 = vpack.c.b16 %v430, %v429
      %447 = vmatprep.subr.bf16.mxu0 0
      %448 = vmatpush1.bf16.msra.mxu0 %v431
      %449 = vmatprep.subr.bf16.mxu0 0
      %450 = vmatpush1.bf16.msra.mxu0 %v432
      %451 = vmatprep.subr.bf16.mxu0 0
      %452 = vmatpush1.bf16.msra.mxu0 %v433
      %453 = vmatprep.subr.bf16.mxu0 0
      %454 = vmatpush1.bf16.msra.mxu0 %v434
      %455 = vmatprep.subr.bf16.mxu0 0
      %456 = vmatpush1.bf16.msra.mxu0 %v435
      %457 = vmatprep.subr.bf16.mxu0 0
      %458 = vmatpush1.bf16.msra.mxu0 %v436
      %459 = vmatprep.subr.bf16.mxu0 0
      %460 = vmatpush1.bf16.msra.mxu0 %v437
      %461 = vmatprep.subr.bf16.mxu0 0
      %462 = vmatpush1.bf16.msra.mxu0 %v438
      %463 = vmatprep.subr.bf16.mxu0 0
      %464 = vmatpush1.bf16.msra.mxu0 0
      %465 = vmatprep.subr.bf16.mxu0 0
      %466 = vmatpush1.bf16.msra.mxu0 0
      %467 = vmatprep.subr.bf16.mxu0 0
      %468 = vmatpush1.bf16.msra.mxu0 0
      %469 = vmatprep.subr.bf16.mxu0 0
      %470 = vmatpush1.bf16.msra.mxu0 0
      %471 = vmatprep.subr.bf16.mxu0 0
      %472 = vmatpush1.bf16.msra.mxu0 0
      %473 = vmatprep.subr.bf16.mxu0 0
      %474 = vmatpush1.bf16.msra.mxu0 0
      %475 = vmatprep.subr.bf16.mxu0 0
      %476 = vmatpush1.bf16.msra.mxu0 0
      %477 = vmatprep.subr.bf16.mxu0 0
      %478 = vmatpush1.bf16.msra.mxu0 0
      %479 = vmatprep.mubr.bf16.mxu0 0
      %480 = vmatmul.mubr.bf16.gmra.mrb[0].mxu0 %v375
      %v481 = vpop.f32.mrb[0].mxu0
      %v482 = vadd.f32 %v397, %v481
      %v483 = vpop.f32.mrb[0].mxu0
      %v484 = vpop.f32.mrb[0].mxu0
      %v485 = vadd.f32 %v397, %v484
      %v486 = vpop.f32.mrb[0].mxu0
      %487 = vdwg.mxu0
      %v488 = vmax.f32 %v482, 0.0
      %v489 = vmax.f32 %v485, 0.0
      %v490 = vpack.c.bf16 %v489, %v488
      %v491 = vld [vmem:[#allocation11] sm:$0xf]
      %v492 = vld [vmem:[#allocation11 + $0x4] sm:$0xf]
      %v493 = vld [vmem:[#allocation11 + $0x8] sm:$0xf]
      %v494 = vld [vmem:[#allocation11 + $0xc] sm:$0xf]
      %v495 = vld [vmem:[#allocation11 + $0x10] sm:$0xf]
      %v496 = vld [vmem:[#allocation11 + $0x14] sm:$0xf]
      %v497 = vld [vmem:[#allocation11 + $0x18] sm:$0xf]
      %v498 = vld [vmem:[#allocation11 + $0x1c] sm:$0xf]
      %v499 = vld [vmem:[#allocation11 + $0x20] sm:$0xf]
      %v500 = vld [vmem:[#allocation11 + $0x24] sm:$0xf]
      %v501 = vld [vmem:[#allocation11 + $0x28] sm:$0xf]
      %v502 = vld [vmem:[#allocation11 + $0x2c] sm:$0xf]
      %v503 = vld [vmem:[#allocation11 + $0x30] sm:$0xf]
      %v504 = vld [vmem:[#allocation11 + $0x34] sm:$0xf]
      %v505 = vld [vmem:[#allocation11 + $0x38] sm:$0xf]
      %v506 = vld [vmem:[#allocation11 + $0x3c] sm:$0xf]
      %v507 = vld [vmem:[%s8] sm:$0x1]
      %v509 = vlaneseq
      %v510 = vshrl.u32 %v509, 7
      %v511 = vsub.s32 0, %v510
      %v512 = vrot.slane %v507, %v511
      %v530 = vunpack.c.l.b16 %v491
      %v531 = vunpack.c.l.b16 %v492
      %v532 = vunpack.c.l.b16 %v493
      %v533 = vunpack.c.l.b16 %v494
      %v534 = vunpack.c.l.b16 %v495
      %v535 = vunpack.c.l.b16 %v496
      %v536 = vunpack.c.l.b16 %v497
      %v537 = vunpack.c.l.b16 %v498
      %v538 = vunpack.c.l.b16 %v499
      %v539 = vunpack.c.l.b16 %v500
      %v540 = vunpack.c.l.b16 %v501
      %v541 = vunpack.c.l.b16 %v502
      %v542 = vunpack.c.l.b16 %v503
      %v543 = vunpack.c.l.b16 %v504
      %v544 = vunpack.c.l.b16 %v505
      %v545 = vunpack.c.l.b16 %v506
      %v546 = vpack.c.b16 %v531, %v530
      %v547 = vpack.c.b16 %v533, %v532
      %v548 = vpack.c.b16 %v535, %v534
      %v549 = vpack.c.b16 %v537, %v536
      %v550 = vpack.c.b16 %v539, %v538
      %v551 = vpack.c.b16 %v541, %v540
      %v552 = vpack.c.b16 %v543, %v542
      %v553 = vpack.c.b16 %v545, %v544
      %562 = vmatprep.subr.bf16.mxu0 0
      %563 = vmatpush1.bf16.msra.mxu0 %v546
      %564 = vmatprep.subr.bf16.mxu0 0
      %565 = vmatpush1.bf16.msra.mxu0 %v547
      %566 = vmatprep.subr.bf16.mxu0 0
      %567 = vmatpush1.bf16.msra.mxu0 %v548
      %568 = vmatprep.subr.bf16.mxu0 0
      %569 = vmatpush1.bf16.msra.mxu0 %v549
      %570 = vmatprep.subr.bf16.mxu0 0
      %571 = vmatpush1.bf16.msra.mxu0 %v550
      %572 = vmatprep.subr.bf16.mxu0 0
      %573 = vmatpush1.bf16.msra.mxu0 %v551
      %574 = vmatprep.subr.bf16.mxu0 0
      %575 = vmatpush1.bf16.msra.mxu0 %v552
      %576 = vmatprep.subr.bf16.mxu0 0
      %577 = vmatpush1.bf16.msra.mxu0 %v553
      %578 = vmatprep.subr.bf16.mxu0 0
      %579 = vmatpush1.bf16.msra.mxu0 0
      %580 = vmatprep.subr.bf16.mxu0 0
      %581 = vmatpush1.bf16.msra.mxu0 0
      %582 = vmatprep.subr.bf16.mxu0 0
      %583 = vmatpush1.bf16.msra.mxu0 0
      %584 = vmatprep.subr.bf16.mxu0 0
      %585 = vmatpush1.bf16.msra.mxu0 0
      %586 = vmatprep.subr.bf16.mxu0 0
      %587 = vmatpush1.bf16.msra.mxu0 0
      %588 = vmatprep.subr.bf16.mxu0 0
      %589 = vmatpush1.bf16.msra.mxu0 0
      %590 = vmatprep.subr.bf16.mxu0 0
      %591 = vmatpush1.bf16.msra.mxu0 0
      %592 = vmatprep.subr.bf16.mxu0 0
      %593 = vmatpush1.bf16.msra.mxu0 0
      %594 = vmatprep.mubr.bf16.mxu0 0
      %595 = vmatmul.mubr.bf16.gmra.mrb[0].mxu0 %v490
      %v596 = vpop.f32.mrb[0].mxu0
      %v597 = vadd.f32 %v512, %v596
      %v598 = vpop.f32.mrb[0].mxu0
      %v599 = vpop.f32.mrb[0].mxu0
      %v600 = vadd.f32 %v512, %v599
      %v601 = vpop.f32.mrb[0].mxu0
      %602 = vdwg.mxu0
      %v603 = vmax.f32 %v597, 0.0
      %v604 = vmax.f32 %v600, 0.0
      %v605 = vpack.c.bf16 %v604, %v603
      %v606 = vld [vmem:[#allocation12] sm:$0xf]
      %v607 = vld [vmem:[#allocation12 + $0x4] sm:$0xf]
      %v608 = vld [vmem:[#allocation12 + $0x8] sm:$0xf]
      %v609 = vld [vmem:[#allocation12 + $0xc] sm:$0xf]
      %v610 = vld [vmem:[#allocation12 + $0x10] sm:$0xf]
      %v611 = vld [vmem:[#allocation12 + $0x14] sm:$0xf]
      %v612 = vld [vmem:[#allocation12 + $0x18] sm:$0xf]
      %v613 = vld [vmem:[#allocation12 + $0x1c] sm:$0xf]
      %v614 = vld [vmem:[#allocation12 + $0x20] sm:$0xf]
      %v615 = vld [vmem:[#allocation12 + $0x24] sm:$0xf]
      %v616 = vld [vmem:[#allocation12 + $0x28] sm:$0xf]
      %v617 = vld [vmem:[#allocation12 + $0x2c] sm:$0xf]
      %v618 = vld [vmem:[#allocation12 + $0x30] sm:$0xf]
      %v619 = vld [vmem:[#allocation12 + $0x34] sm:$0xf]
      %v620 = vld [vmem:[#allocation12 + $0x38] sm:$0xf]
      %v621 = vld [vmem:[#allocation12 + $0x3c] sm:$0xf]
      %v638 = vunpack.c.l.b16 %v606
      %v639 = vunpack.c.l.b16 %v607
      %v640 = vunpack.c.l.b16 %v608
      %v641 = vunpack.c.l.b16 %v609
      %v642 = vunpack.c.l.b16 %v610
      %v643 = vunpack.c.l.b16 %v611
      %v644 = vunpack.c.l.b16 %v612
      %v645 = vunpack.c.l.b16 %v613
      %v646 = vunpack.c.l.b16 %v614
      %v647 = vunpack.c.l.b16 %v615
      %v648 = vunpack.c.l.b16 %v616
      %v649 = vunpack.c.l.b16 %v617
      %v650 = vunpack.c.l.b16 %v618
      %v651 = vunpack.c.l.b16 %v619
      %v652 = vunpack.c.l.b16 %v620
      %v653 = vunpack.c.l.b16 %v621
      %v654 = vpack.c.b16 %v639, %v638
      %v655 = vpack.c.b16 %v641, %v640
      %v656 = vpack.c.b16 %v643, %v642
      %v657 = vpack.c.b16 %v645, %v644
      %v658 = vpack.c.b16 %v647, %v646
      %v659 = vpack.c.b16 %v649, %v648
      %v660 = vpack.c.b16 %v651, %v650
      %v661 = vpack.c.b16 %v653, %v652
      %670 = vmatprep.subr.bf16.mxu0 0
      %671 = vmatpush1.bf16.msra.mxu0 %v654
      %672 = vmatprep.subr.bf16.mxu0 0
      %673 = vmatpush1.bf16.msra.mxu0 %v655
      %674 = vmatprep.subr.bf16.mxu0 0
      %675 = vmatpush1.bf16.msra.mxu0 %v656
      %676 = vmatprep.subr.bf16.mxu0 0
      %677 = vmatpush1.bf16.msra.mxu0 %v657
      %678 = vmatprep.subr.bf16.mxu0 0
      %679 = vmatpush1.bf16.msra.mxu0 %v658
      %680 = vmatprep.subr.bf16.mxu0 0
      %681 = vmatpush1.bf16.msra.mxu0 %v659
      %682 = vmatprep.subr.bf16.mxu0 0
      %683 = vmatpush1.bf16.msra.mxu0 %v660
      %684 = vmatprep.subr.bf16.mxu0 0
      %685 = vmatpush1.bf16.msra.mxu0 %v661
      %686 = vmatprep.subr.bf16.mxu0 0
      %687 = vmatpush1.bf16.msra.mxu0 0
      %688 = vmatprep.subr.bf16.mxu0 0
      %689 = vmatpush1.bf16.msra.mxu0 0
      %690 = vmatprep.subr.bf16.mxu0 0
      %691 = vmatpush1.bf16.msra.mxu0 0
      %692 = vmatprep.subr.bf16.mxu0 0
      %693 = vmatpush1.bf16.msra.mxu0 0
      %694 = vmatprep.subr.bf16.mxu0 0
      %695 = vmatpush1.bf16.msra.mxu0 0
      %696 = vmatprep.subr.bf16.mxu0 0
      %697 = vmatpush1.bf16.msra.mxu0 0
      %698 = vmatprep.subr.bf16.mxu0 0
      %699 = vmatpush1.bf16.msra.mxu0 0
      %700 = vmatprep.subr.bf16.mxu0 0
      %701 = vmatpush1.bf16.msra.mxu0 0
      %702 = vmatprep.mubr.bf16.mxu0 0
      %703 = vmatmul.mubr.bf16.gmra.mrb[0].mxu0 %v605
      %v704 = vpop.f32.mrb[0].mxu0
      %v705 = vadd.f32 0.0, %v704
      %v706 = vpop.f32.mrb[0].mxu0
      %v707 = vpop.f32.mrb[0].mxu0
      %v708 = vadd.f32 0.0, %v707
      %v709 = vpop.f32.mrb[0].mxu0
      %710 = vdwg.mxu0
      %711 = vst [vmem:[#allocation14] sm:$0xff] %v705
      %712 = vst [vmem:[#allocation14 + $0x8] sm:$0xff] %v708
    $region73: #{tpu_custom_call.1} parent=1 // pred_fallthru
      _
    // Predicated region
    $region74: #{tpu_custom_call.1} parent=1 // pred_check
      _
    $region75: #{tpu_custom_call.1} parent=1 // pred_check_branch
      %714 = sbr.rel (0) target = $region77
    $region76: #{tpu_custom_call.1} parent=1 // pred_region
      %s716 = ssub.s32 256, 256
      %717 = vsyncadd [#allocation5], %s716
      %s718 = sshll.u32 [#allocation14], 4
      %s719 = int_to_ptr.vmem [resolvable:$true] %s718
      %724 = dma.vmem_to_hbm [thread:$0]  %s719, 256, %s10, [#allocation5], 128, 128, 8
    $region77: #{tpu_custom_call.1} parent=1 // pred_fallthru
      _
    // Predicated region
    $region78: #{tpu_custom_call.1} parent=1 // pred_check
      _
    $region79: #{tpu_custom_call.1} parent=1 // pred_check_branch
      %726 = sbr.rel (0) target = $region81
    $region80: #{tpu_custom_call.1} parent=1 // pred_region
      %727 = dma.done [#allocation5], 256
    $region81: #{tpu_custom_call.1} parent=1 // pred_fallthru
      _
    %728 = vsyncpa [#allocation4], 1
    %729 = vsyncpa [#allocation7], 1
    %730 = vsyncpa [#allocation10], 1
    %731 = vsyncpa [#allocation13], 1
    %732 = vsyncpa [#allocation5], 1

</llo_original>
